<compile_context>
chip_gen: v7x
topology: tpu7x:2x2x1
jax: 0.10.0
libtpu: 0.0.40
codegen_flags: <defaults>
</compile_context>

<pallas_src>
import functools
import math

import jax
import jax.numpy as jnp
from jax.experimental import pallas as pl
from jax.experimental.pallas import tpu as pltpu


_LANES = 128                       # lane width (last dim of every block)
_SUBLANES = 8                      # sublane granularity
_TARGET_BLOCK_BYTES = 2 * 1024 * 1024   # ~2 MiB per input block (>=85% HBM roofline)


def _cdiv(a, b):
    return -(-a // b)


def _num_parallel_cores():
    """Grid split for the leading 'parallel' axis (TensorCores per device)."""
    # TODO(synk): verify on v7x that "parallel" dimension semantics actually shard
    # this axis across both TensorCores; if not, switch to pltpu.CORE_PARALLEL /
    # pl.core_map with pltpu.create_tensorcore_mesh.
    try:
        kind = jax.devices()[0].device_kind.lower()
    except Exception:
        return 1
    if "v7" in kind or "v4" in kind or "v5p" in kind:
        return 2
    return 1


def _r_acc_bulk_kernel(g_ref, l_ref, acc_ref, *, d, tm, steps, rows_valid, need_mask):
    s = pl.program_id(0)          # core-split axis ("parallel")
    i = pl.program_id(1)          # row-block axis ("arbitrary", acc resident)

    g = g_ref[...].astype(jnp.float32)
    l = l_ref[...].astype(jnp.float32)
    # indicator = 1.0 where |g - l| - d*|g| < 0   <=>   |g - l| < d*|g|
    ind = (jnp.abs(g - l) < d * jnp.abs(g)).astype(jnp.float32)

    if need_mask:
        # Mask rows beyond the valid extent (partial / duplicated boundary blocks).
        row0 = (s * steps + i) * tm
        rows = row0 + jax.lax.broadcasted_iota(jnp.int32, ind.shape, 0)
        ind = jnp.where(rows < rows_valid, ind, 0.0)

    # Free reshape (minor dims already (8,128)-tiled); sum over vreg-rows -> (8,128).
    part = ind.reshape(tm // _SUBLANES, _SUBLANES, ind.shape[-1]).sum(axis=0)

    @pl.when(i == 0)
    def _():
        acc_ref[...] = part          # direct write on first step (no zero-init pass)

    @pl.when(i > 0)
    def _():
        acc_ref[...] += part


def _r_acc_bulk_count(g2, l2, d):
    """Count of |g-l| < d*|g| over a lane-dense (R, 128) array, via Pallas."""
    R, C = g2.shape
    itemsize = jnp.dtype(g2.dtype).itemsize
    split = _num_parallel_cores()

    # Row-block size chosen by bytes (dtype-aware), multiple of 8, <= R.
    tm_target = max(_SUBLANES, (_TARGET_BLOCK_BYTES // (C * itemsize)) // _SUBLANES * _SUBLANES)
    tm = max(_SUBLANES, min(tm_target, (R // _SUBLANES) * _SUBLANES))

    n_blocks = _cdiv(R, tm)
    if n_blocks < split:
        split = 1                     # not enough blocks to split usefully
    steps = _cdiv(n_blocks, split)
    need_mask = (split * steps * tm != R)

    block_bytes = tm * C * itemsize
    # 2 inputs x 2 pipeline buffers + elementwise temporaries + headroom.
    vmem_limit = int(max(16 << 20, min(32 << 20, 8 * block_bytes + (2 << 20))))

    kernel = functools.partial(
        _r_acc_bulk_kernel,
        d=float(d), tm=tm, steps=steps, rows_valid=R, need_mask=need_mask,
    )

    last_block = n_blocks - 1

    def in_map(s, i):
        # Clamp so a (rare) fully-out-of-range block re-reads the last valid block;
        # its contribution is zeroed by the in-kernel row mask.
        return (jnp.minimum(s * steps + i, last_block), 0)

    acc = pl.pallas_call(
        kernel,
        out_shape=jax.ShapeDtypeStruct((split * _SUBLANES, C), jnp.float32),
        grid_spec=pltpu.PrefetchScalarGridSpec(
            num_scalar_prefetch=0,
            grid=(split, steps),
            in_specs=[
                pl.BlockSpec((tm, C), in_map),
                pl.BlockSpec((tm, C), in_map),
            ],
            out_specs=pl.BlockSpec((_SUBLANES, C), lambda s, i: (s, 0)),
        ),
        compiler_params=pltpu.CompilerParams(
            dimension_semantics=("parallel", "arbitrary"),
            vmem_limit_bytes=vmem_limit,
        ),
        cost_estimate=pl.CostEstimate(
            flops=6 * R * C,
            transcendentals=0,
            bytes_accessed=2 * R * C * itemsize + split * _SUBLANES * C * 4,
        ),
    )(g2, l2)

    return jnp.sum(acc)


def r_acc(g, logits, d=0.2):
    """Pallas TPU implementation of custom_r_acc. Returns a scalar f32.

    Note: indicator.mean(dim=1).mean() equals the mean over all elements, so the
    computation is a flat count / total regardless of input rank.
    """
    assert 0.0 < d < 1.0, "Relative allowable error proportion must be between 0 and 1"
    assert g.shape == logits.shape

    total = math.prod(g.shape) if g.shape else 1
    C = _LANES
    R = total // C
    rem = total - R * C

    g_flat = g.reshape(-1)
    l_flat = logits.reshape(-1)

    count = jnp.float32(0.0)
    bulk = 0

    if R >= _SUBLANES:
        bulk = R * C
        if rem == 0:
            # Free bitcast reshape: no copies, no padding.
            g2 = g_flat.reshape(R, C)
            l2 = l_flat.reshape(R, C)
        else:
            # Lane-misaligned total: relayout of the 128-aligned bulk is unavoidable
            # for a lane-dense kernel; the <128-element tail is handled below.
            g2 = g_flat[:bulk].reshape(R, C)
            l2 = l_flat[:bulk].reshape(R, C)
        count = count + _r_acc_bulk_count(g2, l2, d)

    if bulk < total:
        # Tiny tail (< 8*128 elements): plain jnp reduction.
        tg = g_flat[bulk:].astype(jnp.float32)
        tl = l_flat[bulk:].astype(jnp.float32)
        count = count + jnp.sum((jnp.abs(tg - tl) < d * jnp.abs(tg)).astype(jnp.float32))

    return count / jnp.float32(total)


def _r_acc_ref(g, logits, d=0.2):
    """Pure-JAX reference mirroring the PyTorch code."""
    if g.ndim == 1:
        g = g[:, None]
        logits = logits[:, None]
    rel = d * jnp.abs(g)
    err = jnp.abs(g - logits)
    err_min = err - rel
    ind = jnp.where(err_min < 0, jnp.ones_like(err_min), jnp.zeros_like(err_min))
    return ind.mean(axis=1).mean()


if __name__ == "__main__":
    key = jax.random.PRNGKey(0)
    ks = jax.random.split(key, 8)

    def check(g, l, d=0.2):
        out = jax.block_until_ready(r_acc(g, l, d=d))
        ref = _r_acc_ref(g, l, d=d)
        assert jnp.allclose(out, ref, atol=1e-6, rtol=1e-6), (g.shape, out, ref)

    # 2-D, lane-aligned (zero-copy kernel path)
    g = jax.random.normal(ks[0], (16, 128), dtype=jnp.float32)
    l = g + 0.3 * jax.random.normal(ks[1], (16, 128), dtype=jnp.float32)
    check(g, l)

    # 1-D promotion path (free flatten, kernel path)
    check(g.reshape(-1), l.reshape(-1))

    # Row count not a multiple of the block -> in-kernel iota masking path
    g2 = jax.random.normal(ks[2], (100, 128), dtype=jnp.float32)
    l2 = g2 + 0.3 * jax.random.normal(ks[3], (100, 128), dtype=jnp.float32)
    check(g2, l2)

    # Lane-misaligned total: aligned bulk through the kernel + tiny jnp tail
    g3 = jax.random.normal(ks[4], (9, 130), dtype=jnp.float32)
    l3 = g3 + 0.3 * jax.random.normal(ks[5], (9, 130), dtype=jnp.float32)
    check(g3, l3)

    # Tiny misaligned input (< 8 full lane-rows): pure-jnp fallback
    g4 = jax.random.normal(ks[6], (7, 33), dtype=jnp.float32)
    l4 = g4 + 0.3 * jax.random.normal(ks[7], (7, 33), dtype=jnp.float32)
    check(g4, l4)

    print("KERNEL_OK")
</pallas_src>

<mosaic_0001>
module attributes {stable_mosaic.version = 11 : i64} {
  func.func @_r_acc_bulk_kernel(%arg0: i32, %arg1: i32, %arg2: memref<16x128xf32, #tpu.memory_space<vmem>>, %arg3: memref<16x128xf32, #tpu.memory_space<vmem>>, %arg4: memref<8x128xf32, #tpu.memory_space<vmem>>) attributes {dimension_semantics = [#tpu.dimension_semantics<parallel>, #tpu.dimension_semantics<arbitrary>], iteration_bounds = array<i64: 1, 1>, scalar_prefetch = 0 : i64, scratch_operands = 0 : i64, tpu.core_type = #tpu.core_type<tc>, window_params = [{transform_indices = @transform_0, window_bounds = array<i64: 16, 128>}, {transform_indices = @transform_1, window_bounds = array<i64: 16, 128>}, {transform_indices = @transform_2, window_bounds = array<i64: 8, 128>}]} {
    %c0 = arith.constant 0 : index
    %c0_0 = arith.constant 0 : index
    %0 = vector.load %arg2[%c0, %c0_0] : memref<16x128xf32, #tpu.memory_space<vmem>>, vector<16x128xf32>
    %c0_1 = arith.constant 0 : index
    %c0_2 = arith.constant 0 : index
    %1 = vector.load %arg3[%c0_1, %c0_2] : memref<16x128xf32, #tpu.memory_space<vmem>>, vector<16x128xf32>
    %2 = arith.subf %0, %1 : vector<16x128xf32>
    %3 = math.absf %2 : vector<16x128xf32>
    %4 = math.absf %0 : vector<16x128xf32>
    %cst = arith.constant 2.000000e-01 : f32
    %5 = vector.broadcast %cst : f32 to vector<16x128xf32>
    %6 = arith.mulf %5, %4 : vector<16x128xf32>
    %7 = arith.cmpf olt, %3, %6 : vector<16x128xf32>
    %8 = arith.extui %7 : vector<16x128xi1> to vector<16x128xi32>
    %9 = arith.sitofp %8 : vector<16x128xi32> to vector<16x128xf32>
    %10 = vector.shape_cast %9 : vector<16x128xf32> to vector<2x8x128xf32>
    %cst_3 = arith.constant dense<0.000000e+00> : vector<8x128xf32>
    %11 = vector.multi_reduction <add>, %10, %cst_3 [0] : vector<2x8x128xf32> to vector<8x128xf32>
    %c0_i32 = arith.constant 0 : i32
    %12 = arith.cmpi eq, %arg1, %c0_i32 : i32
    %13 = arith.extui %12 : i1 to i32
    %c0_i32_4 = arith.constant 0 : i32
    %14 = arith.cmpi ne, %13, %c0_i32_4 : i32
    scf.if %14 {
      %c0_7 = arith.constant 0 : index
      %c0_8 = arith.constant 0 : index
      %18 = vector.load %arg4[%c0_7, %c0_8] : memref<8x128xf32, #tpu.memory_space<vmem>>, vector<8x128xf32>
      tpu.vector_store %arg4[%c0_7, %c0_8], %11 {strides = array<i32>} : memref<8x128xf32, #tpu.memory_space<vmem>>, vector<8x128xf32>,
    } else {
    }
    %c0_i32_5 = arith.constant 0 : i32
    %15 = arith.cmpi sgt, %arg1, %c0_i32_5 : i32
    %16 = arith.extui %15 : i1 to i32
    %c0_i32_6 = arith.constant 0 : i32
    %17 = arith.cmpi ne, %16, %c0_i32_6 : i32
    scf.if %17 {
      %c0_7 = arith.constant 0 : index
      %c0_8 = arith.constant 0 : index
      %18 = vector.load %arg4[%c0_7, %c0_8] : memref<8x128xf32, #tpu.memory_space<vmem>>, vector<8x128xf32>
      %19 = arith.addf %18, %11 : vector<8x128xf32>
      %c0_9 = arith.constant 0 : index
      %c0_10 = arith.constant 0 : index
      %20 = vector.load %arg4[%c0_9, %c0_10] : memref<8x128xf32, #tpu.memory_space<vmem>>, vector<8x128xf32>
      tpu.vector_store %arg4[%c0_9, %c0_10], %19 {strides = array<i32>} : memref<8x128xf32, #tpu.memory_space<vmem>>, vector<8x128xf32>,
    } else {
    }
    return
  }
  func.func @transform_0(%arg0: i32, %arg1: i32) -> (i32, i32) {
    %c1_i32 = arith.constant 1 : i32
    %0 = arith.muli %arg0, %c1_i32 : i32
    %1 = arith.addi %0, %arg1 : i32
    %c0_i32 = arith.constant 0 : i32
    %2 = arith.minsi %1, %c0_i32 : i32
    %c0_i32_0 = arith.constant 0 : i32
    %c0_i32_1 = arith.constant 0 : i32
    return %2, %c0_i32_0 : i32, i32
  }
  func.func @transform_1(%arg0: i32, %arg1: i32) -> (i32, i32) {
    %c1_i32 = arith.constant 1 : i32
    %0 = arith.muli %arg0, %c1_i32 : i32
    %1 = arith.addi %0, %arg1 : i32
    %c0_i32 = arith.constant 0 : i32
    %2 = arith.minsi %1, %c0_i32 : i32
    %c0_i32_0 = arith.constant 0 : i32
    %c0_i32_1 = arith.constant 0 : i32
    return %2, %c0_i32_0 : i32, i32
  }
  func.func @transform_2(%arg0: i32, %arg1: i32) -> (i32, i32) {
    %c0_i32 = arith.constant 0 : i32
    %c0_i32_0 = arith.constant 0 : i32
    return %arg0, %c0_i32 : i32, i32
  }
}

</mosaic_0001>

<llo_original>
// kernel: tpu_custom_call.1
$region0: #{tpu_custom_call.1}
  #allocation0 [shape = 'u32[]', space=smem, size = 0x4, offset = 0x4, fixed_abs, tag = 'smem constant byte address 0x4 - core index']
  #allocation1 [shape = 'u32[144,128]{1,0:T(1,128)}', space=vmem, size = 0x12000, scoped, tag = 'internal scratch']
  %s0 = inlined_call_operand.hbm [shape: f32[16,128], index: 0, kind: input, shape index: {}]
  %s1 = inlined_call_operand.hbm [shape: f32[16,128], index: 1, kind: input, shape index: {}]
  %s2 = inlined_call_operand.hbm [shape: f32[8,128], index: 2, kind: output, shape index: {}]
  %s3 = sld [smem:[#allocation0]]
  $region34: #{tpu_custom_call.1} parent=0
    _
  %s5 = ssub.s32 1, %s3
  %s6 = scalar_select 0, %s5, %s3
  $region1: #{tpu_custom_call.1} parent=0
    #allocation2 [shape = 'u8[8192]{0}', space=vmem, size = 0x2000, scoped, tag = 'input window, operand 0, single buffered']
    #allocation3 [shape = 's32[1]{0}', space=sflag, size = 0x4, scoped, tag = 'scoped memory for tpu_custom_call.1']
    #allocation4 [shape = 's32[1]{0}', space=sflag, size = 0x4, scoped, tag = 'scoped memory for tpu_custom_call.1']
    #allocation5 [shape = 'u8[8192]{0}', space=vmem, size = 0x2000, scoped, tag = 'input window, operand 1, single buffered']
    #allocation6 [shape = 's32[1]{0}', space=sflag, size = 0x4, scoped, tag = 'scoped memory for tpu_custom_call.1']
    #allocation7 [shape = 'u8[4096]{0}', space=vmem, size = 0x1000, scoped, tag = 'output window, operand 0, single buffered']
    %7 = vsyncpa [#allocation3], 0
    %8 = vsyncpa [#allocation6], 0
    %9 = vsyncpa [#allocation4], 0
    // Predicated region
    $region2: #{tpu_custom_call.1} parent=1 // pred_check
      _
    $region3: #{tpu_custom_call.1} parent=1 // pred_check_branch
      %11 = sbr.rel (0) target = $region5
    $region4: #{tpu_custom_call.1} parent=1 // pred_region
      %s12 = sadd.s32 0, 0
      %p13 = scmp.lt.s32.totalorder %s12, 0
      %s14 = scalar_select %p13, %s12, 0
      %s15 = smul.u32 2, %s14
      %s17 = ssub.s32 256, 256
      %18 = vsyncadd [#allocation3], %s17
      %s19 = smul.addr %s15, 128
      %s20 = scalar_lea.hbm %s0, %s19
      %s21 = sshll.u32 [#allocation2], 4
      %s22 = int_to_ptr.vmem [resolvable:$true] %s21
      %27 = dma.hbm_to_vmem [thread:$0]  %s20, 256, %s22, [#allocation3], 128, 128, 8
    $region5: #{tpu_custom_call.1} parent=1 // pred_fallthru
      _
    // Predicated region
    $region6: #{tpu_custom_call.1} parent=1 // pred_check
      _
    $region7: #{tpu_custom_call.1} parent=1 // pred_check_branch
      %29 = sbr.rel (0) target = $region9
    $region8: #{tpu_custom_call.1} parent=1 // pred_region
      %s30 = sadd.s32 0, 0
      %p31 = scmp.lt.s32.totalorder %s30, 0
      %s32 = scalar_select %p31, %s30, 0
      %s33 = smul.u32 2, %s32
      %s35 = ssub.s32 256, 256
      %36 = vsyncadd [#allocation6], %s35
      %s37 = smul.addr %s33, 128
      %s38 = scalar_lea.hbm %s1, %s37
      %s39 = sshll.u32 [#allocation5], 4
      %s40 = int_to_ptr.vmem [resolvable:$true] %s39
      %45 = dma.hbm_to_vmem [thread:$0]  %s38, 256, %s40, [#allocation6], 128, 128, 8
    $region9: #{tpu_custom_call.1} parent=1 // pred_fallthru
      _
    // Predicated region
    $region10: #{tpu_custom_call.1} parent=1 // pred_check
      _
    $region11: #{tpu_custom_call.1} parent=1 // pred_check_branch
      %47 = sbr.rel (0) target = $region13
    $region12: #{tpu_custom_call.1} parent=1 // pred_region
      %48 = dma.done [#allocation3], 256
    $region13: #{tpu_custom_call.1} parent=1 // pred_fallthru
      _
    // Predicated region
    $region14: #{tpu_custom_call.1} parent=1 // pred_check
      _
    $region15: #{tpu_custom_call.1} parent=1 // pred_check_branch
      %50 = sbr.rel (0) target = $region17
    $region16: #{tpu_custom_call.1} parent=1 // pred_region
      %51 = dma.done [#allocation6], 256
    $region17: #{tpu_custom_call.1} parent=1 // pred_fallthru
      _
    %s52 = sadd.s32 0, 0
    %p53 = scmp.lt.s32.totalorder %s52, 0
    %s54 = scalar_select %p53, %s52, 0
    %s55 = smul.u32 2, %s54
    %s56 = sadd.s32 0, 0
    %p57 = scmp.lt.s32.totalorder %s56, 0
    %s58 = scalar_select %p57, %s56, 0
    %s59 = smul.u32 2, %s58
    %v60 = vld [vmem:[#allocation2] sm:$0xff]
    %v61 = vld [vmem:[#allocation2 + $0x8] sm:$0xff]
    %v62 = vld [vmem:[#allocation5] sm:$0xff]
    %v63 = vld [vmem:[#allocation5 + $0x8] sm:$0xff]
    %v64 = vsub.f32 %v60, %v62
    %v65 = vsub.f32 %v61, %v63
    %v66 = vand.u32 2147483647, %v64
    %v67 = vand.u32 2147483647, %v65
    %v68 = vand.u32 2147483647, %v60
    %v69 = vand.u32 2147483647, %v61
    %v70 = vmul.f32 %v68, 0.2
    %v71 = vmul.f32 %v69, 0.2
    %vm72 = vcmp.lt.f32.partialorder %v66, %v70
    %vm73 = vcmp.lt.f32.partialorder %v67, %v71
    %v74 = vsel %vm72, 1, 0
    %v75 = vsel %vm73, 1, 0
    %v76 = vcvt.s32.f32 %v74
    %v77 = vcvt.s32.f32 %v75
    %v78 = vadd.f32 %v76, %v77
    %p79 = scmp.eq.s32.totalorder 0, 0
    // Predicated region
    $region18: #{tpu_custom_call.1} parent=1 // pred_check
      %p80 = pneg %p79
    $region19: #{tpu_custom_call.1} parent=1 // pred_check_branch
      %82 = sbr.rel (%p80) target = $region21
    $region20: #{tpu_custom_call.1} parent=1 // pred_region
      %83 = vst [vmem:[#allocation7] sm:$0xff] %v78
    $region21: #{tpu_custom_call.1} parent=1 // pred_fallthru
      _
    %p84 = scmp.gt.s32.totalorder 0, 0
    // Predicated region
    $region22: #{tpu_custom_call.1} parent=1 // pred_check
      %p85 = pneg %p84
    $region23: #{tpu_custom_call.1} parent=1 // pred_check_branch
      %87 = sbr.rel (%p85) target = $region25
    $region24: #{tpu_custom_call.1} parent=1 // pred_region
      %v88 = vld [vmem:[#allocation7] sm:$0xff]
      %v89 = vadd.f32 %v88, %v78
      %90 = vst [vmem:[#allocation7] sm:$0xff] %v89
    $region25: #{tpu_custom_call.1} parent=1 // pred_fallthru
      _
    // Predicated region
    $region26: #{tpu_custom_call.1} parent=1 // pred_check
      _
    $region27: #{tpu_custom_call.1} parent=1 // pred_check_branch
      %92 = sbr.rel (0) target = $region29
    $region28: #{tpu_custom_call.1} parent=1 // pred_region
      %s94 = ssub.s32 128, 128
      %95 = vsyncadd [#allocation4], %s94
      %s97 = sshll.u32 [#allocation7], 4
      %s98 = int_to_ptr.vmem [resolvable:$true] %s97
      %100 = dma.vmem_to_hbm [thread:$0]  %s98, 128, %s2, [#allocation4]
    $region29: #{tpu_custom_call.1} parent=1 // pred_fallthru
      _
    // Predicated region
    $region30: #{tpu_custom_call.1} parent=1 // pred_check
      _
    $region31: #{tpu_custom_call.1} parent=1 // pred_check_branch
      %102 = sbr.rel (0) target = $region33
    $region32: #{tpu_custom_call.1} parent=1 // pred_region
      %103 = dma.done [#allocation4], 128
    $region33: #{tpu_custom_call.1} parent=1 // pred_fallthru
      _
    %104 = vsyncpa [#allocation3], 1
    %105 = vsyncpa [#allocation6], 1
    %106 = vsyncpa [#allocation4], 1

</llo_original>
